<compile_context>
chip_gen: v6e
topology: v6e:2x2x1
jax: 0.10.0
libtpu: 0.0.40
codegen_flags: <defaults>
</compile_context>

<pallas_src>
import functools

import jax
import jax.numpy as jnp
from jax.experimental import pallas as pl
from jax.experimental.pallas import tpu as pltpu


def grasp_mlp_kernel(x_ref, w1_ref, b1_ref, w2_ref, b2_ref, w3_ref, b3_ref,
                     out_ref, *, tb, seq):
    # x_ref: (tm, D) bf16 rows = tb whole batches * seq sequence positions.
    x = x_ref[...]

    # Layer 1: Linear(D -> H) + ReLU.  bf16 operands, f32 accumulate; bias/ReLU f32.
    h1 = jnp.dot(x, w1_ref[...], preferred_element_type=jnp.float32)
    h1 = jnp.maximum(h1 + b1_ref[...], 0.0)                      # (tm, H) f32

    # Layer 2: Linear(H -> H) + ReLU.
    h2 = jnp.dot(h1.astype(jnp.bfloat16), w2_ref[...],
                 preferred_element_type=jnp.float32)
    h2 = jnp.maximum(h2 + b2_ref[...], 0.0)                      # (tm, H) f32

    # Mean over the sequence axis, per batch, BEFORE layer 3 (linearity:
    # mean_s(h2 @ w3 + b3) == (mean_s h2) @ w3 + b3).  Rows are batch-major,
    # so (tm, H) -> (tb, S, H) is a pure sublane split and the sum is a cheap
    # sublane reduction -- no pooling matmul, no pool constant in VMEM.
    h2_mean = jnp.sum(h2.reshape(tb, seq, h2.shape[-1]), axis=1) * (1.0 / seq)

    # Layer 3: Linear(H -> OUT) on the pooled activations only (tb rows).
    out = jnp.dot(h2_mean.astype(jnp.bfloat16), w3_ref[...],
                  preferred_element_type=jnp.float32)
    out_ref[...] = out + b3_ref[...]                             # (tb, OUT) f32


def _choose_batch_tile(B, S, target_rows):
    """Whole-batch row tile: tb batches (tb*S rows) per grid step."""
    tb = max(1, target_rows // max(S, 1))
    # Prefer >= 2 grid tiles so v7x's two TensorCores both get work, but only
    # when the cap still allows a multiple-of-8 sublane tile (layout rule).
    half = -(-B // 2)
    if half >= 8:
        tb = min(tb, half)
    if tb >= B:
        return B                       # single tile: blocks == full arrays
    return max(8, (tb // 8) * 8)       # keep sublane dim a multiple of 8


@functools.partial(jax.jit, static_argnames=("target_rows",))
def grasp_mlp_forward(x, params, *, target_rows=8192):
    """x: (B, S, D) float32 -> (pred_actions (B, 16), pred_reward (B, 4))."""
    w1, b1, w2, b2, w3, b3 = params
    B, S, D = x.shape
    H = w1.shape[1]
    OUT = w3.shape[1]

    tb = _choose_batch_tile(B, S, target_rows)
    n_tiles = -(-B // tb)
    Bp = n_tiles * tb
    if Bp != B:  # pad with dummy batches; padded rows never mix with real ones
        x = jnp.concatenate([x, jnp.zeros((Bp - B, S, D), x.dtype)], axis=0)

    # Flatten + cast to bf16 in the wrapper (free in XLA, halves streamed HBM
    # bytes); no reshapes of the input inside the kernel.
    x2 = x.reshape(Bp * S, D).astype(jnp.bfloat16)
    tm = tb * S

    # Weights in bf16 (MXU-native on all generations); biases stay f32.
    w1b = w1.astype(jnp.bfloat16)
    w2b = w2.astype(jnp.bfloat16)
    w3b = w3.astype(jnp.bfloat16)

    def const(shape):
        return pl.BlockSpec(shape, lambda i: (0, 0))   # VMEM-resident across grid

    grid_spec = pltpu.PrefetchScalarGridSpec(
        num_scalar_prefetch=0,
        grid=(n_tiles,),
        in_specs=[
            pl.BlockSpec((tm, D), lambda i: (i, 0)),   # x rows (pipelined)
            const(w1b.shape), const(b1.shape),         # resident weights/biases
            const(w2b.shape), const(b2.shape),
            const(w3b.shape), const(b3.shape),
        ],
        out_specs=pl.BlockSpec((tb, OUT), lambda i: (i, 0)),
    )

    flops = 2 * Bp * S * (D * H + H * H) + 2 * Bp * H * OUT
    bytes_accessed = (2 * (x2.size + w1b.size + w2b.size + w3b.size)
                      + 4 * (b1.size + b2.size + b3.size + Bp * OUT))

    out = pl.pallas_call(
        functools.partial(grasp_mlp_kernel, tb=tb, seq=S),
        out_shape=jax.ShapeDtypeStruct((Bp, OUT), jnp.float32),
        grid_spec=grid_spec,
        compiler_params=pltpu.CompilerParams(
            dimension_semantics=("parallel",),          # shards tiles over v7x's 2 TCs
            vmem_limit_bytes=48 * 1024 * 1024,          # headroom under v7x's 64 MiB
        ),
        cost_estimate=pl.CostEstimate(
            flops=flops, transcendentals=0, bytes_accessed=bytes_accessed),
    )(x2, w1b, b1, w2b, b2, w3b, b3)

    out = out[:B]                                      # drop padded batches
    return out[:, :16], out[:, 16:]


def init_params(key, input_dim=24, hidden_dim=256, output_dim=20):
    """Deterministic synthetic init; weights stored as (in, out)."""
    k1, k2, k3, k4, k5, k6 = jax.random.split(key, 6)

    def lin(kw, kb, fan_in, fan_out):
        bound = 1.0 / jnp.sqrt(fan_in)
        w = jax.random.uniform(kw, (fan_in, fan_out), jnp.float32, -bound, bound)
        b = jax.random.uniform(kb, (1, fan_out), jnp.float32, -bound, bound)
        return w, b

    w1, b1 = lin(k1, k2, input_dim, hidden_dim)
    w2, b2 = lin(k3, k4, hidden_dim, hidden_dim)
    w3, b3 = lin(k5, k6, hidden_dim, output_dim)
    return (w1, b1, w2, b2, w3, b3)


def reference_forward(x, params):
    """Pure-JAX f32 reference matching the PyTorch forward."""
    w1, b1, w2, b2, w3, b3 = params
    h = jnp.maximum(x @ w1 + b1[0], 0.0)
    h = jnp.maximum(h @ w2 + b2[0], 0.0)
    out = h @ w3 + b3[0]          # (B, S, 20)
    out_mean = out.mean(axis=1)   # (B, 20)
    return out_mean[:, :16], out_mean[:, 16:]


if __name__ == "__main__":
    key = jax.random.PRNGKey(0)
    kx, kp, kx2 = jax.random.split(key, 3)

    D, H, OUT = 24, 256, 20
    params = init_params(kp, input_dim=D, hidden_dim=H, output_dim=OUT)

    # Small shapes implied by the forward (3-D x so mean(dim=1)+2-D indexing type-check).
    B, S = 2, 8
    x = jax.random.normal(kx, (B, S, D), jnp.float32)
    pred_actions, pred_reward = grasp_mlp_forward(x, params)
    jax.block_until_ready((pred_actions, pred_reward))

    ref_a, ref_r = reference_forward(x, params)
    assert pred_actions.shape == (B, 16) and pred_reward.shape == (B, 4)
    # bf16 matmul operands (f32 accumulate) -> relaxed tolerances vs f32 reference.
    assert jnp.allclose(pred_actions, ref_a, atol=2e-2, rtol=2e-2)
    assert jnp.allclose(pred_reward, ref_r, atol=2e-2, rtol=2e-2)

    # Larger batch exercising the multi-tile pipelined grid + batch padding.
    B2, S2 = 50, 8
    x_big = jax.random.normal(kx2, (B2, S2, D), jnp.float32)
    a2, r2 = grasp_mlp_forward(x_big, params, target_rows=128)  # tb=16 -> grid=(4,)
    jax.block_until_ready((a2, r2))

    ra2, rr2 = reference_forward(x_big, params)
    assert a2.shape == (B2, 16) and r2.shape == (B2, 4)
    assert jnp.allclose(a2, ra2, atol=2e-2, rtol=2e-2)
    assert jnp.allclose(r2, rr2, atol=2e-2, rtol=2e-2)

    print("KERNEL_OK")
</pallas_src>

<mosaic_0001>
module attributes {stable_mosaic.version = 11 : i64} {
  func.func @grasp_mlp_kernel(%arg0: i32, %arg1: memref<16x24xbf16, #tpu.memory_space<vmem>>, %arg2: memref<24x256xbf16, #tpu.memory_space<vmem>>, %arg3: memref<1x256xf32, #tpu.memory_space<vmem>>, %arg4: memref<256x256xbf16, #tpu.memory_space<vmem>>, %arg5: memref<1x256xf32, #tpu.memory_space<vmem>>, %arg6: memref<256x20xbf16, #tpu.memory_space<vmem>>, %arg7: memref<1x20xf32, #tpu.memory_space<vmem>>, %arg8: memref<2x20xf32, #tpu.memory_space<vmem>>) attributes {dimension_semantics = [#tpu.dimension_semantics<parallel>], iteration_bounds = array<i64: 1>, scalar_prefetch = 0 : i64, scratch_operands = 0 : i64, tpu.core_type = #tpu.core_type<tc>, window_params = [{transform_indices = @transform_0, window_bounds = array<i64: 16, 24>}, {pipeline_mode = #tpu.pipeline_mode<synchronous>, transform_indices = @transform_1, window_bounds = array<i64: 24, 256>}, {pipeline_mode = #tpu.pipeline_mode<synchronous>, transform_indices = @transform_2, window_bounds = array<i64: 1, 256>}, {pipeline_mode = #tpu.pipeline_mode<synchronous>, transform_indices = @transform_3, window_bounds = array<i64: 256, 256>}, {pipeline_mode = #tpu.pipeline_mode<synchronous>, transform_indices = @transform_4, window_bounds = array<i64: 1, 256>}, {pipeline_mode = #tpu.pipeline_mode<synchronous>, transform_indices = @transform_5, window_bounds = array<i64: 256, 20>}, {pipeline_mode = #tpu.pipeline_mode<synchronous>, transform_indices = @transform_6, window_bounds = array<i64: 1, 20>}, {transform_indices = @transform_7, window_bounds = array<i64: 2, 20>}]} {
    %c0 = arith.constant 0 : index
    %c0_0 = arith.constant 0 : index
    %0 = vector.load %arg1[%c0, %c0_0] : memref<16x24xbf16, #tpu.memory_space<vmem>>, vector<16x24xbf16>
    %c0_1 = arith.constant 0 : index
    %c0_2 = arith.constant 0 : index
    %1 = vector.load %arg2[%c0_1, %c0_2] : memref<24x256xbf16, #tpu.memory_space<vmem>>, vector<24x256xbf16>
    %cst = arith.constant dense<0.000000e+00> : vector<16x256xf32>
    %2 = tpu.matmul %0, %1, %cst {dimension_numbers = #tpu.dot_dimension_numbers<[1], [0], [0], [1], [0, 0, 1, 1], [], []>} : vector<16x24xbf16>, vector<24x256xbf16>, vector<16x256xf32> -> vector<16x256xf32>
    %c0_3 = arith.constant 0 : index
    %c0_4 = arith.constant 0 : index
    %3 = vector.load %arg3[%c0_3, %c0_4] : memref<1x256xf32, #tpu.memory_space<vmem>>, vector<1x256xf32>
    %4 = vector.broadcast %3 : vector<1x256xf32> to vector<16x256xf32>
    %5 = arith.addf %2, %4 : vector<16x256xf32>
    %cst_5 = arith.constant 0.000000e+00 : f32
    %6 = vector.broadcast %cst_5 : f32 to vector<16x256xf32>
    %7 = arith.maximumf %5, %6 : vector<16x256xf32>
    %8 = arith.truncf %7 : vector<16x256xf32> to vector<16x256xbf16>
    %c0_6 = arith.constant 0 : index
    %c0_7 = arith.constant 0 : index
    %9 = vector.load %arg4[%c0_6, %c0_7] : memref<256x256xbf16, #tpu.memory_space<vmem>>, vector<256x256xbf16>
    %cst_8 = arith.constant dense<0.000000e+00> : vector<16x256xf32>
    %10 = tpu.matmul %8, %9, %cst_8 {dimension_numbers = #tpu.dot_dimension_numbers<[1], [0], [0], [1], [0, 0, 1, 1], [], []>} : vector<16x256xbf16>, vector<256x256xbf16>, vector<16x256xf32> -> vector<16x256xf32>
    %c0_9 = arith.constant 0 : index
    %c0_10 = arith.constant 0 : index
    %11 = vector.load %arg5[%c0_9, %c0_10] : memref<1x256xf32, #tpu.memory_space<vmem>>, vector<1x256xf32>
    %12 = vector.broadcast %11 : vector<1x256xf32> to vector<16x256xf32>
    %13 = arith.addf %10, %12 : vector<16x256xf32>
    %cst_11 = arith.constant 0.000000e+00 : f32
    %14 = vector.broadcast %cst_11 : f32 to vector<16x256xf32>
    %15 = arith.maximumf %13, %14 : vector<16x256xf32>
    %16 = vector.shape_cast %15 : vector<16x256xf32> to vector<2x8x256xf32>
    %cst_12 = arith.constant dense<0.000000e+00> : vector<2x256xf32>
    %17 = vector.multi_reduction <add>, %16, %cst_12 [1] : vector<2x8x256xf32> to vector<2x256xf32>
    %cst_13 = arith.constant 1.250000e-01 : f32
    %18 = vector.broadcast %cst_13 : f32 to vector<2x256xf32>
    %19 = arith.mulf %17, %18 : vector<2x256xf32>
    %20 = arith.truncf %19 : vector<2x256xf32> to vector<2x256xbf16>
    %c0_14 = arith.constant 0 : index
    %c0_15 = arith.constant 0 : index
    %21 = vector.load %arg6[%c0_14, %c0_15] : memref<256x20xbf16, #tpu.memory_space<vmem>>, vector<256x20xbf16>
    %cst_16 = arith.constant dense<0.000000e+00> : vector<2x20xf32>
    %22 = tpu.matmul %20, %21, %cst_16 {dimension_numbers = #tpu.dot_dimension_numbers<[1], [0], [0], [1], [0, 0, 1, 1], [], []>} : vector<2x256xbf16>, vector<256x20xbf16>, vector<2x20xf32> -> vector<2x20xf32>
    %c0_17 = arith.constant 0 : index
    %c0_18 = arith.constant 0 : index
    %23 = vector.load %arg7[%c0_17, %c0_18] : memref<1x20xf32, #tpu.memory_space<vmem>>, vector<1x20xf32>
    %24 = vector.broadcast %23 : vector<1x20xf32> to vector<2x20xf32>
    %25 = arith.addf %22, %24 : vector<2x20xf32>
    %c0_19 = arith.constant 0 : index
    %c0_20 = arith.constant 0 : index
    %26 = vector.load %arg8[%c0_19, %c0_20] : memref<2x20xf32, #tpu.memory_space<vmem>>, vector<2x20xf32>
    tpu.vector_store %arg8[%c0_19, %c0_20], %25 {strides = array<i32>} : memref<2x20xf32, #tpu.memory_space<vmem>>, vector<2x20xf32>,
    return
  }
  func.func @transform_0(%arg0: i32) -> (i32, i32) {
    %c0_i32 = arith.constant 0 : i32
    %c0_i32_0 = arith.constant 0 : i32
    return %arg0, %c0_i32 : i32, i32
  }
  func.func @transform_1(%arg0: i32) -> (i32, i32) {
    %c0_i32 = arith.constant 0 : i32
    %c0_i32_0 = arith.constant 0 : i32
    %c0_i32_1 = arith.constant 0 : i32
    return %c0_i32, %c0_i32_0 : i32, i32
  }
  func.func @transform_2(%arg0: i32) -> (i32, i32) {
    %c0_i32 = arith.constant 0 : i32
    %c0_i32_0 = arith.constant 0 : i32
    %c0_i32_1 = arith.constant 0 : i32
    return %c0_i32, %c0_i32_0 : i32, i32
  }
  func.func @transform_3(%arg0: i32) -> (i32, i32) {
    %c0_i32 = arith.constant 0 : i32
    %c0_i32_0 = arith.constant 0 : i32
    %c0_i32_1 = arith.constant 0 : i32
    return %c0_i32, %c0_i32_0 : i32, i32
  }
  func.func @transform_4(%arg0: i32) -> (i32, i32) {
    %c0_i32 = arith.constant 0 : i32
    %c0_i32_0 = arith.constant 0 : i32
    %c0_i32_1 = arith.constant 0 : i32
    return %c0_i32, %c0_i32_0 : i32, i32
  }
  func.func @transform_5(%arg0: i32) -> (i32, i32) {
    %c0_i32 = arith.constant 0 : i32
    %c0_i32_0 = arith.constant 0 : i32
    %c0_i32_1 = arith.constant 0 : i32
    return %c0_i32, %c0_i32_0 : i32, i32
  }
  func.func @transform_6(%arg0: i32) -> (i32, i32) {
    %c0_i32 = arith.constant 0 : i32
    %c0_i32_0 = arith.constant 0 : i32
    %c0_i32_1 = arith.constant 0 : i32
    return %c0_i32, %c0_i32_0 : i32, i32
  }
  func.func @transform_7(%arg0: i32) -> (i32, i32) {
    %c0_i32 = arith.constant 0 : i32
    %c0_i32_0 = arith.constant 0 : i32
    return %arg0, %c0_i32 : i32, i32
  }
}

</mosaic_0001>

<llo_original>
// kernel: grasp_mlp_forward.1
$region0: #{grasp_mlp_forward.1}
  #allocation0 [shape = 'u32[]', space=smem, size = 0x4, offset = 0x4, fixed_abs, tag = 'smem constant byte address 0x4 - core index']
  #allocation1 [shape = 'u32[144,128]{1,0:T(1,128)}', space=vmem, size = 0x12000, scoped, tag = 'internal scratch']
  %s0 = inlined_call_operand.vmem [shape: bf16[16,24], index: 0, kind: input, shape index: {}]
  %s1 = inlined_call_operand.vmem [shape: bf16[24,256], index: 1, kind: input, shape index: {}]
  %s2 = inlined_call_operand.vmem [shape: f32[1,256], index: 2, kind: input, shape index: {}]
  %s3 = inlined_call_operand.vmem [shape: bf16[256,256], index: 3, kind: input, shape index: {}]
  %s4 = inlined_call_operand.vmem [shape: f32[1,256], index: 4, kind: input, shape index: {}]
  %s5 = inlined_call_operand.vmem [shape: bf16[256,20], index: 5, kind: input, shape index: {}]
  %s6 = inlined_call_operand.vmem [shape: f32[1,20], index: 6, kind: input, shape index: {}]
  %s7 = inlined_call_operand.vmem [shape: f32[2,20], index: 7, kind: output, shape index: {}]
  %s8 = sld [smem:[#allocation0]]
  $region38: #{grasp_mlp_forward.1} parent=0
    _
  %s10 = ssub.s32 1, %s8
  %s11 = scalar_select 0, %s10, %s8
  // Predicated region
  $region2: #{grasp_mlp_forward.1} parent=0 // pred_check
    _
  $region3: #{grasp_mlp_forward.1} parent=0 // pred_check_branch
    %13 = sbr.rel (0) target = $region5
  $region4: #{grasp_mlp_forward.1} parent=0 // pred_region
    _
  $region5: #{grasp_mlp_forward.1} parent=0 // pred_fallthru
    _
  // Predicated region
  $region6: #{grasp_mlp_forward.1} parent=0 // pred_check
    _
  $region7: #{grasp_mlp_forward.1} parent=0 // pred_check_branch
    %15 = sbr.rel (0) target = $region9
  $region8: #{grasp_mlp_forward.1} parent=0 // pred_region
    _
  $region9: #{grasp_mlp_forward.1} parent=0 // pred_fallthru
    _
  // Predicated region
  $region10: #{grasp_mlp_forward.1} parent=0 // pred_check
    _
  $region11: #{grasp_mlp_forward.1} parent=0 // pred_check_branch
    %17 = sbr.rel (0) target = $region13
  $region12: #{grasp_mlp_forward.1} parent=0 // pred_region
    _
  $region13: #{grasp_mlp_forward.1} parent=0 // pred_fallthru
    _
  // Predicated region
  $region14: #{grasp_mlp_forward.1} parent=0 // pred_check
    _
  $region15: #{grasp_mlp_forward.1} parent=0 // pred_check_branch
    %19 = sbr.rel (0) target = $region17
  $region16: #{grasp_mlp_forward.1} parent=0 // pred_region
    _
  $region17: #{grasp_mlp_forward.1} parent=0 // pred_fallthru
    _
  // Predicated region
  $region18: #{grasp_mlp_forward.1} parent=0 // pred_check
    _
  $region19: #{grasp_mlp_forward.1} parent=0 // pred_check_branch
    %21 = sbr.rel (0) target = $region21
  $region20: #{grasp_mlp_forward.1} parent=0 // pred_region
    _
  $region21: #{grasp_mlp_forward.1} parent=0 // pred_fallthru
    _
  // Predicated region
  $region22: #{grasp_mlp_forward.1} parent=0 // pred_check
    _
  $region23: #{grasp_mlp_forward.1} parent=0 // pred_check_branch
    %23 = sbr.rel (0) target = $region25
  $region24: #{grasp_mlp_forward.1} parent=0 // pred_region
    _
  $region25: #{grasp_mlp_forward.1} parent=0 // pred_fallthru
    _
  // Predicated region
  $region26: #{grasp_mlp_forward.1} parent=0 // pred_check
    _
  $region27: #{grasp_mlp_forward.1} parent=0 // pred_check_branch
    %25 = sbr.rel (0) target = $region29
  $region28: #{grasp_mlp_forward.1} parent=0 // pred_region
    _
  $region29: #{grasp_mlp_forward.1} parent=0 // pred_fallthru
    _
  %v27 = vld [vmem:[%s0] sm:$0xf]
  %v28 = vld [vmem:[%s0 + $0x4] sm:$0xf]
  %v29 = vld [vmem:[%s1] sm:$0xff]
  %v30 = vld [vmem:[%s1 + $0x8] sm:$0xff]
  %v31 = vld [vmem:[%s1 + $0x10] sm:$0xff]
  %v32 = vld [vmem:[%s2] sm:$0x3]
  %v34 = vlaneseq
  %v35 = vshrl.u32 %v34, 7
  %v36 = vsub.s32 0, %v35
  %v37 = vrot.slane %v32, %v36
  %v38 = vlaneseq
  %v39 = vshrl.u32 %v38, 7
  %v40 = vsub.s32 1, %v39
  %v41 = vrot.slane %v32, %v40
  %v46 = vunpack.c.l.b16 %v27
  %v47 = vunpack.c.l.b16 %v28
  %v48 = vpack.c.b16 %v47, %v46
  %v52 = vunpack.c.l.b16 %v29
  %v53 = vunpack.c.h.b16 %v29
  %v54 = vunpack.c.l.b16 %v30
  %v55 = vunpack.c.h.b16 %v30
  %v56 = vunpack.c.l.b16 %v31
  %v57 = vunpack.c.h.b16 %v31
  %v58 = vpack.c.b16 %v54, %v52
  %v59 = vpack.c.b16 %v55, %v53
  %v60 = vpack.c.b16 %v56, %v56
  %v61 = vpack.c.b16 %v57, %v57
  %vm64 = vcmask 195584
  %v66 = vsel %vm64, %v48, 0
  %vm68 = vcmask 1043456
  %v70 = vsel %vm68, %v60, 0
  %v73 = vsel %vm68, %v61, 0
  %75 = vmatprep.subr.bf16.mxu0 0
  %76 = vmatpush1.bf16.msra.mxu0 0
  %77 = vmatprep.subr.bf16.mxu0 0
  %78 = vmatpush1.bf16.msra.mxu0 0
  %79 = vmatprep.subr.bf16.mxu0 0
  %80 = vmatpush1.bf16.msra.mxu0 0
  %81 = vmatprep.subr.bf16.mxu0 0
  %82 = vmatpush1.bf16.msra.mxu0 0
  %83 = vmatprep.subr.bf16.mxu0 0
  %84 = vmatpush1.bf16.msra.mxu0 0
  %85 = vmatprep.subr.bf16.mxu0 0
  %86 = vmatpush1.bf16.msra.mxu0 0
  %87 = vmatprep.subr.bf16.mxu0 %v73
  %88 = vmatpush1.bf16.msra.mxu0 %v70
  %89 = vmatprep.subr.bf16.mxu0 %v59
  %90 = vmatpush1.bf16.msra.mxu0 %v58
  %91 = vmatprep.subr.bf16.mxu0 0
  %92 = vmatpush2.bf16.msra.mxu0 0
  %93 = vmatprep.subr.bf16.mxu0 0
  %94 = vmatpush2.bf16.msra.mxu0 0
  %95 = vmatprep.subr.bf16.mxu0 0
  %96 = vmatpush2.bf16.msra.mxu0 0
  %97 = vmatprep.subr.bf16.mxu0 0
  %98 = vmatpush2.bf16.msra.mxu0 0
  %99 = vmatprep.subr.bf16.mxu0 0
  %100 = vmatpush2.bf16.msra.mxu0 0
  %101 = vmatprep.subr.bf16.mxu0 0
  %102 = vmatpush2.bf16.msra.mxu0 0
  %103 = vmatprep.subr.bf16.mxu0 0
  %104 = vmatpush2.bf16.msra.mxu0 0
  %105 = vmatprep.subr.bf16.mxu0 0
  %106 = vmatpush2.bf16.msra.mxu0 0
  %107 = vmatprep.mubr.bf16.mxu0 0
  %108 = vmatmul.mubr.bf16.gmra.mxu0 %v66
  %v109 = vpop.f32.mrf.mxu0
  %v110 = vadd.f32 %v37, %v109
  %v111 = vpop.f32.mrf.mxu0
  %v112 = vadd.f32 %v41, %v111
  %v113 = vpop.f32.mrf.mxu0
  %v114 = vadd.f32 %v37, %v113
  %v115 = vpop.f32.mrf.mxu0
  %v116 = vadd.f32 %v41, %v115
  %117 = vdwg.mxu0
  %v118 = vmax.f32 %v110, 0.0
  %v119 = vmax.f32 %v112, 0.0
  %v120 = vmax.f32 %v114, 0.0
  %v121 = vmax.f32 %v116, 0.0
  %v122 = vpack.c.bf16 %v120, %v118
  %v123 = vpack.c.bf16 %v121, %v119
  %v124 = vld [vmem:[%s3] sm:$0xff]
  %v125 = vld [vmem:[%s3 + $0x8] sm:$0xff]
  %v126 = vld [vmem:[%s3 + $0x10] sm:$0xff]
  %v127 = vld [vmem:[%s3 + $0x18] sm:$0xff]
  %v128 = vld [vmem:[%s3 + $0x20] sm:$0xff]
  %v129 = vld [vmem:[%s3 + $0x28] sm:$0xff]
  %v130 = vld [vmem:[%s3 + $0x30] sm:$0xff]
  %v131 = vld [vmem:[%s3 + $0x38] sm:$0xff]
  %v132 = vld [vmem:[%s3 + $0x40] sm:$0xff]
  %v133 = vld [vmem:[%s3 + $0x48] sm:$0xff]
  %v134 = vld [vmem:[%s3 + $0x50] sm:$0xff]
  %v135 = vld [vmem:[%s3 + $0x58] sm:$0xff]
  %v136 = vld [vmem:[%s3 + $0x60] sm:$0xff]
  %v137 = vld [vmem:[%s3 + $0x68] sm:$0xff]
  %v138 = vld [vmem:[%s3 + $0x70] sm:$0xff]
  %v139 = vld [vmem:[%s3 + $0x78] sm:$0xff]
  %v140 = vld [vmem:[%s3 + $0x80] sm:$0xff]
  %v141 = vld [vmem:[%s3 + $0x88] sm:$0xff]
  %v142 = vld [vmem:[%s3 + $0x90] sm:$0xff]
  %v143 = vld [vmem:[%s3 + $0x98] sm:$0xff]
  %v144 = vld [vmem:[%s3 + $0xa0] sm:$0xff]
  %v145 = vld [vmem:[%s3 + $0xa8] sm:$0xff]
  %v146 = vld [vmem:[%s3 + $0xb0] sm:$0xff]
  %v147 = vld [vmem:[%s3 + $0xb8] sm:$0xff]
  %v148 = vld [vmem:[%s3 + $0xc0] sm:$0xff]
  %v149 = vld [vmem:[%s3 + $0xc8] sm:$0xff]
  %v150 = vld [vmem:[%s3 + $0xd0] sm:$0xff]
  %v151 = vld [vmem:[%s3 + $0xd8] sm:$0xff]
  %v152 = vld [vmem:[%s3 + $0xe0] sm:$0xff]
  %v153 = vld [vmem:[%s3 + $0xe8] sm:$0xff]
  %v154 = vld [vmem:[%s3 + $0xf0] sm:$0xff]
  %v155 = vld [vmem:[%s3 + $0xf8] sm:$0xff]
  %v156 = vld [vmem:[%s4] sm:$0x3]
  %v158 = vlaneseq
  %v159 = vshrl.u32 %v158, 7
  %v160 = vsub.s32 0, %v159
  %v161 = vrot.slane %v156, %v160
  %v162 = vlaneseq
  %v163 = vshrl.u32 %v162, 7
  %v164 = vsub.s32 1, %v163
  %v165 = vrot.slane %v156, %v164
  %v200 = vunpack.c.l.b16 %v124
  %v201 = vunpack.c.h.b16 %v124
  %v202 = vunpack.c.l.b16 %v125
  %v203 = vunpack.c.h.b16 %v125
  %v204 = vunpack.c.l.b16 %v126
  %v205 = vunpack.c.h.b16 %v126
  %v206 = vunpack.c.l.b16 %v127
  %v207 = vunpack.c.h.b16 %v127
  %v208 = vunpack.c.l.b16 %v128
  %v209 = vunpack.c.h.b16 %v128
  %v210 = vunpack.c.l.b16 %v129
  %v211 = vunpack.c.h.b16 %v129
  %v212 = vunpack.c.l.b16 %v130
  %v213 = vunpack.c.h.b16 %v130
  %v214 = vunpack.c.l.b16 %v131
  %v215 = vunpack.c.h.b16 %v131
  %v216 = vunpack.c.l.b16 %v132
  %v217 = vunpack.c.h.b16 %v132
  %v218 = vunpack.c.l.b16 %v133
  %v219 = vunpack.c.h.b16 %v133
  %v220 = vunpack.c.l.b16 %v134
  %v221 = vunpack.c.h.b16 %v134
  %v222 = vunpack.c.l.b16 %v135
  %v223 = vunpack.c.h.b16 %v135
  %v224 = vunpack.c.l.b16 %v136
  %v225 = vunpack.c.h.b16 %v136
  %v226 = vunpack.c.l.b16 %v137
  %v227 = vunpack.c.h.b16 %v137
  %v228 = vunpack.c.l.b16 %v138
  %v229 = vunpack.c.h.b16 %v138
  %v230 = vunpack.c.l.b16 %v139
  %v231 = vunpack.c.h.b16 %v139
  %v232 = vunpack.c.l.b16 %v140
  %v233 = vunpack.c.h.b16 %v140
  %v234 = vunpack.c.l.b16 %v141
  %v235 = vunpack.c.h.b16 %v141
  %v236 = vunpack.c.l.b16 %v142
  %v237 = vunpack.c.h.b16 %v142
  %v238 = vunpack.c.l.b16 %v143
  %v239 = vunpack.c.h.b16 %v143
  %v240 = vunpack.c.l.b16 %v144
  %v241 = vunpack.c.h.b16 %v144
  %v242 = vunpack.c.l.b16 %v145
  %v243 = vunpack.c.h.b16 %v145
  %v244 = vunpack.c.l.b16 %v146
  %v245 = vunpack.c.h.b16 %v146
  %v246 = vunpack.c.l.b16 %v147
  %v247 = vunpack.c.h.b16 %v147
  %v248 = vunpack.c.l.b16 %v148
  %v249 = vunpack.c.h.b16 %v148
  %v250 = vunpack.c.l.b16 %v149
  %v251 = vunpack.c.h.b16 %v149
  %v252 = vunpack.c.l.b16 %v150
  %v253 = vunpack.c.h.b16 %v150
  %v254 = vunpack.c.l.b16 %v151
  %v255 = vunpack.c.h.b16 %v151
  %v256 = vunpack.c.l.b16 %v152
  %v257 = vunpack.c.h.b16 %v152
  %v258 = vunpack.c.l.b16 %v153
  %v259 = vunpack.c.h.b16 %v153
  %v260 = vunpack.c.l.b16 %v154
  %v261 = vunpack.c.h.b16 %v154
  %v262 = vunpack.c.l.b16 %v155
  %v263 = vunpack.c.h.b16 %v155
  %v264 = vpack.c.b16 %v202, %v200
  %v265 = vpack.c.b16 %v203, %v201
  %v266 = vpack.c.b16 %v206, %v204
  %v267 = vpack.c.b16 %v207, %v205
  %v268 = vpack.c.b16 %v210, %v208
  %v269 = vpack.c.b16 %v211, %v209
  %v270 = vpack.c.b16 %v214, %v212
  %v271 = vpack.c.b16 %v215, %v213
  %v272 = vpack.c.b16 %v218, %v216
  %v273 = vpack.c.b16 %v219, %v217
  %v274 = vpack.c.b16 %v222, %v220
  %v275 = vpack.c.b16 %v223, %v221
  %v276 = vpack.c.b16 %v226, %v224
  %v277 = vpack.c.b16 %v227, %v225
  %v278 = vpack.c.b16 %v230, %v228
  %v279 = vpack.c.b16 %v231, %v229
  %v280 = vpack.c.b16 %v234, %v232
  %v281 = vpack.c.b16 %v235, %v233
  %v282 = vpack.c.b16 %v238, %v236
  %v283 = vpack.c.b16 %v239, %v237
  %v284 = vpack.c.b16 %v242, %v240
  %v285 = vpack.c.b16 %v243, %v241
  %v286 = vpack.c.b16 %v246, %v244
  %v287 = vpack.c.b16 %v247, %v245
  %v288 = vpack.c.b16 %v250, %v248
  %v289 = vpack.c.b16 %v251, %v249
  %v290 = vpack.c.b16 %v254, %v252
  %v291 = vpack.c.b16 %v255, %v253
  %v292 = vpack.c.b16 %v258, %v256
  %v293 = vpack.c.b16 %v259, %v257
  %v294 = vpack.c.b16 %v262, %v260
  %v295 = vpack.c.b16 %v263, %v261
  %328 = vmatprep.subr.bf16.mxu0 %v279
  %329 = vmatpush1.bf16.msra.mxu0 %v278
  %330 = vmatprep.subr.bf16.mxu0 %v277
  %331 = vmatpush1.bf16.msra.mxu0 %v276
  %332 = vmatprep.subr.bf16.mxu0 %v275
  %333 = vmatpush1.bf16.msra.mxu0 %v274
  %334 = vmatprep.subr.bf16.mxu0 %v273
  %335 = vmatpush1.bf16.msra.mxu0 %v272
  %336 = vmatprep.subr.bf16.mxu0 %v271
  %337 = vmatpush1.bf16.msra.mxu0 %v270
  %338 = vmatprep.subr.bf16.mxu0 %v269
  %339 = vmatpush1.bf16.msra.mxu0 %v268
  %340 = vmatprep.subr.bf16.mxu0 %v267
  %341 = vmatpush1.bf16.msra.mxu0 %v266
  %342 = vmatprep.subr.bf16.mxu0 %v265
  %343 = vmatpush1.bf16.msra.mxu0 %v264
  %344 = vmatprep.subr.bf16.mxu0 %v295
  %345 = vmatpush2.bf16.msra.mxu0 %v294
  %346 = vmatprep.subr.bf16.mxu0 %v293
  %347 = vmatpush2.bf16.msra.mxu0 %v292
  %348 = vmatprep.subr.bf16.mxu0 %v291
  %349 = vmatpush2.bf16.msra.mxu0 %v290
  %350 = vmatprep.subr.bf16.mxu0 %v289
  %351 = vmatpush2.bf16.msra.mxu0 %v288
  %352 = vmatprep.subr.bf16.mxu0 %v287
  %353 = vmatpush2.bf16.msra.mxu0 %v286
  %354 = vmatprep.subr.bf16.mxu0 %v285
  %355 = vmatpush2.bf16.msra.mxu0 %v284
  %356 = vmatprep.subr.bf16.mxu0 %v283
  %357 = vmatpush2.bf16.msra.mxu0 %v282
  %358 = vmatprep.subr.bf16.mxu0 %v281
  %359 = vmatpush2.bf16.msra.mxu0 %v280
  %360 = vmatprep.mubr.bf16.mxu0 %v123
  %361 = vmatmul.mubr.bf16.gmra.mxu0 %v122
  %v362 = vpop.f32.mrf.mxu0
  %v363 = vadd.f32 %v161, %v362
  %v364 = vpop.f32.mrf.mxu0
  %v365 = vadd.f32 %v165, %v364
  %v366 = vpop.f32.mrf.mxu0
  %v367 = vadd.f32 %v161, %v366
  %v368 = vpop.f32.mrf.mxu0
  %v369 = vadd.f32 %v165, %v368
  %370 = vdwg.mxu0
  %v371 = vmax.f32 %v363, 0.0
  %v372 = vmax.f32 %v365, 0.0
  %v373 = vmax.f32 %v367, 0.0
  %v374 = vmax.f32 %v369, 0.0
  %v375 = vrot.slane %v371, 4
  %v376 = vadd.f32 %v371, %v375
  %v377 = vrot.slane %v376, 2
  %v378 = vadd.f32 %v376, %v377
  %v379 = vrot.slane %v378, 1
  %v380 = vadd.f32 %v378, %v379
  %v381 = vrot.slane %v372, 4
  %v382 = vadd.f32 %v372, %v381
  %v383 = vrot.slane %v382, 2
  %v384 = vadd.f32 %v382, %v383
  %v385 = vrot.slane %v384, 1
  %v386 = vadd.f32 %v384, %v385
  %v387 = vrot.slane %v373, 4
  %v388 = vadd.f32 %v373, %v387
  %v389 = vrot.slane %v388, 2
  %v390 = vadd.f32 %v388, %v389
  %v391 = vrot.slane %v390, 1
  %v392 = vadd.f32 %v390, %v391
  %v393 = vrot.slane %v374, 4
  %v394 = vadd.f32 %v374, %v393
  %v395 = vrot.slane %v394, 2
  %v396 = vadd.f32 %v394, %v395
  %v397 = vrot.slane %v396, 1
  %v398 = vadd.f32 %v396, %v397
  %v399 = vmul.f32 %v380, 0.125
  %v400 = vmul.f32 %v386, 0.125
  %v401 = vmul.f32 %v392, 0.125
  %v402 = vmul.f32 %v398, 0.125
  %v403 = vpack.c.bf16 %v399, %v399
  %v404 = vpack.c.bf16 %v400, %v400
  %v405 = vpack.c.bf16 %v401, %v401
  %v406 = vpack.c.bf16 %v402, %v402
  %v407 = vld [vmem:[%s5] sm:$0xf]
  %v408 = vld [vmem:[%s5 + $0x4] sm:$0xf]
  %v409 = vld [vmem:[%s5 + $0x8] sm:$0xf]
  %v410 = vld [vmem:[%s5 + $0xc] sm:$0xf]
  %v411 = vld [vmem:[%s5 + $0x10] sm:$0xf]
  %v412 = vld [vmem:[%s5 + $0x14] sm:$0xf]
  %v413 = vld [vmem:[%s5 + $0x18] sm:$0xf]
  %v414 = vld [vmem:[%s5 + $0x1c] sm:$0xf]
  %v415 = vld [vmem:[%s5 + $0x20] sm:$0xf]
  %v416 = vld [vmem:[%s5 + $0x24] sm:$0xf]
  %v417 = vld [vmem:[%s5 + $0x28] sm:$0xf]
  %v418 = vld [vmem:[%s5 + $0x2c] sm:$0xf]
  %v419 = vld [vmem:[%s5 + $0x30] sm:$0xf]
  %v420 = vld [vmem:[%s5 + $0x34] sm:$0xf]
  %v421 = vld [vmem:[%s5 + $0x38] sm:$0xf]
  %v422 = vld [vmem:[%s5 + $0x3c] sm:$0xf]
  %v423 = vld [vmem:[%s5 + $0x40] sm:$0xf]
  %v424 = vld [vmem:[%s5 + $0x44] sm:$0xf]
  %v425 = vld [vmem:[%s5 + $0x48] sm:$0xf]
  %v426 = vld [vmem:[%s5 + $0x4c] sm:$0xf]
  %v427 = vld [vmem:[%s5 + $0x50] sm:$0xf]
  %v428 = vld [vmem:[%s5 + $0x54] sm:$0xf]
  %v429 = vld [vmem:[%s5 + $0x58] sm:$0xf]
  %v430 = vld [vmem:[%s5 + $0x5c] sm:$0xf]
  %v431 = vld [vmem:[%s5 + $0x60] sm:$0xf]
  %v432 = vld [vmem:[%s5 + $0x64] sm:$0xf]
  %v433 = vld [vmem:[%s5 + $0x68] sm:$0xf]
  %v434 = vld [vmem:[%s5 + $0x6c] sm:$0xf]
  %v435 = vld [vmem:[%s5 + $0x70] sm:$0xf]
  %v436 = vld [vmem:[%s5 + $0x74] sm:$0xf]
  %v437 = vld [vmem:[%s5 + $0x78] sm:$0xf]
  %v438 = vld [vmem:[%s5 + $0x7c] sm:$0xf]
  %v439 = vld [vmem:[%s6] sm:$0x1]
  %v441 = vlaneseq
  %v442 = vshrl.u32 %v441, 7
  %v443 = vsub.s32 0, %v442
  %v444 = vrot.slane %v439, %v443
  %v450 = vunpack.c.l.b16 %v403
  %v451 = vunpack.c.l.b16 %v404
  %v452 = vunpack.c.l.b16 %v405
  %v453 = vunpack.c.l.b16 %v406
  %vm454 = vcmask 1041409
  %v455 = vsel %vm454, %v452, %v450
  %v456 = vsel %vm454, %v453, %v451
  %v457 = vpack.c.b16 %v455, %v455
  %v458 = vpack.c.b16 %v456, %v456
  %v493 = vunpack.c.l.b16 %v407
  %v494 = vunpack.c.l.b16 %v408
  %v495 = vunpack.c.l.b16 %v409
  %v496 = vunpack.c.l.b16 %v410
  %v497 = vunpack.c.l.b16 %v411
  %v498 = vunpack.c.l.b16 %v412
  %v499 = vunpack.c.l.b16 %v413
  %v500 = vunpack.c.l.b16 %v414
  %v501 = vunpack.c.l.b16 %v415
  %v502 = vunpack.c.l.b16 %v416
  %v503 = vunpack.c.l.b16 %v417
  %v504 = vunpack.c.l.b16 %v418
  %v505 = vunpack.c.l.b16 %v419
  %v506 = vunpack.c.l.b16 %v420
  %v507 = vunpack.c.l.b16 %v421
  %v508 = vunpack.c.l.b16 %v422
  %v509 = vunpack.c.l.b16 %v423
  %v510 = vunpack.c.l.b16 %v424
  %v511 = vunpack.c.l.b16 %v425
  %v512 = vunpack.c.l.b16 %v426
  %v513 = vunpack.c.l.b16 %v427
  %v514 = vunpack.c.l.b16 %v428
  %v515 = vunpack.c.l.b16 %v429
  %v516 = vunpack.c.l.b16 %v430
  %v517 = vunpack.c.l.b16 %v431
  %v518 = vunpack.c.l.b16 %v432
  %v519 = vunpack.c.l.b16 %v433
  %v520 = vunpack.c.l.b16 %v434
  %v521 = vunpack.c.l.b16 %v435
  %v522 = vunpack.c.l.b16 %v436
  %v523 = vunpack.c.l.b16 %v437
  %v524 = vunpack.c.l.b16 %v438
  %v525 = vpack.c.b16 %v494, %v493
  %v526 = vpack.c.b16 %v496, %v495
  %v527 = vpack.c.b16 %v498, %v497
  %v528 = vpack.c.b16 %v500, %v499
  %v529 = vpack.c.b16 %v502, %v501
  %v530 = vpack.c.b16 %v504, %v503
  %v531 = vpack.c.b16 %v506, %v505
  %v532 = vpack.c.b16 %v508, %v507
  %v533 = vpack.c.b16 %v510, %v509
  %v534 = vpack.c.b16 %v512, %v511
  %v535 = vpack.c.b16 %v514, %v513
  %v536 = vpack.c.b16 %v516, %v515
  %v537 = vpack.c.b16 %v518, %v517
  %v538 = vpack.c.b16 %v520, %v519
  %v539 = vpack.c.b16 %v522, %v521
  %v540 = vpack.c.b16 %v524, %v523
  %557 = vmatprep.subr.bf16.mxu0 0
  %558 = vmatpush1.bf16.msra.mxu0 %v532
  %559 = vmatprep.subr.bf16.mxu0 0
  %560 = vmatpush1.bf16.msra.mxu0 %v531
  %561 = vmatprep.subr.bf16.mxu0 0
  %562 = vmatpush1.bf16.msra.mxu0 %v530
  %563 = vmatprep.subr.bf16.mxu0 0
  %564 = vmatpush1.bf16.msra.mxu0 %v529
  %565 = vmatprep.subr.bf16.mxu0 0
  %566 = vmatpush1.bf16.msra.mxu0 %v528
  %567 = vmatprep.subr.bf16.mxu0 0
  %568 = vmatpush1.bf16.msra.mxu0 %v527
  %569 = vmatprep.subr.bf16.mxu0 0
  %570 = vmatpush1.bf16.msra.mxu0 %v526
  %571 = vmatprep.subr.bf16.mxu0 0
  %572 = vmatpush1.bf16.msra.mxu0 %v525
  %573 = vmatprep.subr.bf16.mxu0 0
  %574 = vmatpush2.bf16.msra.mxu0 %v540
  %575 = vmatprep.subr.bf16.mxu0 0
  %576 = vmatpush2.bf16.msra.mxu0 %v539
  %577 = vmatprep.subr.bf16.mxu0 0
  %578 = vmatpush2.bf16.msra.mxu0 %v538
  %579 = vmatprep.subr.bf16.mxu0 0
  %580 = vmatpush2.bf16.msra.mxu0 %v537
  %581 = vmatprep.subr.bf16.mxu0 0
  %582 = vmatpush2.bf16.msra.mxu0 %v536
  %583 = vmatprep.subr.bf16.mxu0 0
  %584 = vmatpush2.bf16.msra.mxu0 %v535
  %585 = vmatprep.subr.bf16.mxu0 0
  %586 = vmatpush2.bf16.msra.mxu0 %v534
  %587 = vmatprep.subr.bf16.mxu0 0
  %588 = vmatpush2.bf16.msra.mxu0 %v533
  %589 = vmatprep.mubr.bf16.mxu0 %v458
  %590 = vmatmul.mubr.bf16.gmra.mxu0 %v457
  %v591 = vpop.f32.mrf.mxu0
  %v592 = vadd.f32 %v444, %v591
  %v593 = vpop.f32.mrf.mxu0
  %v594 = vpop.f32.mrf.mxu0
  %v595 = vpop.f32.mrf.mxu0
  %596 = vdwg.mxu0
  %vm597 = vcmask 156672
  %598 = vst.msk [vmem:[%s7] sm:$0x3] %vm597, %v592
  // Predicated region
  $region30: #{grasp_mlp_forward.1} parent=0 // pred_check
    _
  $region31: #{grasp_mlp_forward.1} parent=0 // pred_check_branch
    %600 = sbr.rel (0) target = $region33
  $region32: #{grasp_mlp_forward.1} parent=0 // pred_region
    _
  $region33: #{grasp_mlp_forward.1} parent=0 // pred_fallthru
    _
  // Predicated region
  $region34: #{grasp_mlp_forward.1} parent=0 // pred_check
    _
  $region35: #{grasp_mlp_forward.1} parent=0 // pred_check_branch
    %602 = sbr.rel (0) target = $region37
  $region36: #{grasp_mlp_forward.1} parent=0 // pred_region
    _
  $region37: #{grasp_mlp_forward.1} parent=0 // pred_fallthru
    _

</llo_original>
